<compile_context>
chip_gen: v5e
topology: v5e:2x2
jax: 0.10.0
libtpu: 0.0.40
codegen_flags: <defaults>
</compile_context>

<pallas_src>
import functools

import jax
import jax.numpy as jnp
from jax.experimental import pallas as pl
from jax.experimental.pallas import tpu as pltpu


_MIB = 1024 * 1024


# ---------------------------------------------------------------------------
# Hardware-aware sizing
# ---------------------------------------------------------------------------
@functools.lru_cache(maxsize=None)
def _vmem_capacity_bytes():
    """Physical VMEM per TensorCore (best effort; conservative fallback)."""
    try:
        cap = getattr(pltpu.get_tpu_info(), "vmem_capacity_bytes", None)
        if cap:
            return int(cap)
    except Exception:
        pass
    try:
        kind = jax.devices()[0].device_kind.lower()
        if any(t in kind for t in ("v4", "v5", "v6")):
            return 128 * _MIB
    except Exception:
        pass
    return 64 * _MIB          # v7x-style budget: always safe


def _sizing():
    cap = _vmem_capacity_bytes()
    # Scoped VMEM request: 48 MiB on a 64 MiB part (v7x), 96 MiB on 128 MiB parts.
    vmem_limit = int(min(0.75 * cap, 100 * _MIB))
    # Larger tiles amortize the ~0.35us per-grid-step overhead; pass 2 holds
    # in+out double-buffered, so peak ~= 4 * tile — well inside the limit.
    target_tile = 8 * _MIB if cap >= 100 * _MIB else 4 * _MIB
    return vmem_limit, target_tile


def _round_up(n, m):
    return ((n + m - 1) // m) * m


# ---------------------------------------------------------------------------
# Kernels
# ---------------------------------------------------------------------------
def _fused_kernel(x_ref, g_ref, b_ref, o_ref, *, eps, m_total):
    """Fast path: whole (N, C, HW) array resident in VMEM.

    Two-pass (centered) statistics + fused normalize: 1 HBM read + 1 write.
    """
    x = x_ref[...].astype(jnp.float32)                         # (N, C, HW)
    s = jnp.sum(jnp.sum(x, axis=2, keepdims=True), axis=0, keepdims=True)
    mean = s * (1.0 / m_total)                                 # (1, C, 1)
    c = x - mean
    m2 = jnp.sum(jnp.sum(c * c, axis=2, keepdims=True), axis=0, keepdims=True)
    var = m2 * (1.0 / max(m_total - 1.0, 1.0))                 # unbiased (ddof=1)
    std = jnp.sqrt(var)
    scale = g_ref[...] / (std + eps)                           # eps on std (torch-exact)
    o_ref[...] = (c * scale + b_ref[...]).astype(o_ref.dtype)


def _stats_kernel(x_ref, mean_ref, m2_ref, *, tile_count):
    """Per-channel running (mean, M2) over full batch tiles (Chan combine).

    Each tile's contribution is computed centered at the tile mean, then folded
    into the running accumulators with Chan's parallel-variance update (tile
    counts are static), avoiding sum/sum-of-squares cancellation.

    x_ref:    (bn, C, HW) input tile (upcast to f32 in-register)
    mean_ref: (1, C, 1) f32 running mean (resident across the reduction axis)
    m2_ref:   (1, C, 1) f32 running sum of squared deviations
    """
    j = pl.program_id(1)

    x = x_ref[...].astype(jnp.float32)                         # (bn, C, HW)
    s_t = jnp.sum(jnp.sum(x, axis=2, keepdims=True), axis=0, keepdims=True)
    mean_t = s_t * (1.0 / tile_count)                          # (1, C, 1)
    c = x - mean_t
    m2_t = jnp.sum(jnp.sum(c * c, axis=2, keepdims=True), axis=0, keepdims=True)

    @pl.when(j == 0)
    def _init():
        mean_ref[...] = mean_t
        m2_ref[...] = m2_t

    @pl.when(j > 0)
    def _combine():
        cnt_a = j.astype(jnp.float32) * tile_count             # prior tiles all full
        tot = cnt_a + tile_count
        w_b = tile_count / tot
        delta = mean_t - mean_ref[...]
        mean_ref[...] = mean_ref[...] + delta * w_b
        m2_ref[...] = m2_ref[...] + m2_t + (delta * delta) * (cnt_a * w_b)


def _normalize_kernel(x_ref, scale_ref, shift_ref, o_ref):
    """out = x * scale + shift (per-channel scale/shift, one FMA per element)."""
    x = x_ref[...].astype(jnp.float32)                         # (bn, C, HW)
    o_ref[...] = (x * scale_ref[...] + shift_ref[...]).astype(o_ref.dtype)


# ---------------------------------------------------------------------------
# Host-side helpers
# ---------------------------------------------------------------------------
def _chan_combine(mean_a, m2_a, cnt_a, mean_b, m2_b, cnt_b):
    """Chan's parallel-variance combine of two (mean, M2, count) partials."""
    tot = cnt_a + cnt_b
    delta = mean_b - mean_a
    mean = mean_a + delta * (cnt_b / tot)
    m2 = m2_a + m2_b + delta * delta * (cnt_a * cnt_b / tot)
    return mean, m2, tot


# ---------------------------------------------------------------------------
# Wrapper
# ---------------------------------------------------------------------------
def layer_norm_2d(x_nchw, gamma, beta, eps=1e-6, *, force_tiled=False,
                  max_batch_tile=None):
    """Forward pass of LayerNorm2d.

    Args:
      x_nchw: (N, C, H, W) float input (PyTorch conv layout).
      gamma, beta: (C, 1, 1) buffers (ones in the reference module).
      force_tiled / max_batch_tile: testing hooks to exercise the tiled path.
    Returns:
      (N, C, H, W) output in the input dtype.
    """
    N, C, H, W = x_nchw.shape
    HW = H * W
    M = N * HW                                   # samples per channel
    out_dtype = x_nchw.dtype
    itemsize = jnp.dtype(out_dtype).itemsize

    vmem_limit, target_tile = _sizing()

    # Free reshape (no data movement): NCHW -> (N, C, H*W). Lane axis = H*W.
    x3 = x_nchw.reshape(N, C, HW)
    g3 = gamma.reshape(1, C, 1).astype(jnp.float32)
    b3 = beta.reshape(1, C, 1).astype(jnp.float32)

    # Sublane-padding estimate: C is the second-to-last dim of every block.
    sub = max(1, 32 // itemsize)                 # 8 (f32) / 16 (bf16) / 32 (int8)
    c_pad = _round_up(C, sub)
    io_bytes = N * c_pad * HW * itemsize         # one padded copy of x in VMEM
    f32_bytes = N * _round_up(C, 8) * HW * 4     # one f32 temporary of x
    x_bytes = N * C * HW * itemsize              # true HBM traffic for one pass

    # ----------------- fast path: whole array resident in VMEM ---------------
    # Budget: in+out double-buffered (4*io) + ~3 f32 temporaries (x_f32, c, sq).
    fast_fit = (4 * io_bytes + 3 * f32_bytes) <= int(0.9 * vmem_limit)
    if fast_fit and not force_tiled:
        out3 = pl.pallas_call(
            functools.partial(_fused_kernel, eps=eps, m_total=float(M)),
            out_shape=jax.ShapeDtypeStruct((N, C, HW), out_dtype),
            grid_spec=pltpu.PrefetchScalarGridSpec(
                num_scalar_prefetch=0,
                grid=(1,),
                in_specs=[
                    pl.BlockSpec((N, C, HW), lambda i: (0, 0, 0)),
                    pl.BlockSpec((1, C, 1), lambda i: (0, 0, 0)),
                    pl.BlockSpec((1, C, 1), lambda i: (0, 0, 0)),
                ],
                out_specs=pl.BlockSpec((N, C, HW), lambda i: (0, 0, 0)),
            ),
            compiler_params=pltpu.CompilerParams(
                dimension_semantics=("arbitrary",),
                vmem_limit_bytes=vmem_limit),
            cost_estimate=pl.CostEstimate(
                flops=7 * N * C * HW, transcendentals=0,
                bytes_accessed=2 * x_bytes),
        )(x3, g3, b3)
        return out3.reshape(N, C, H, W)

    # ----------------- tiled path: 2 reads + 1 write of x --------------------
    per_batch_bytes = c_pad * HW * itemsize
    bn = max(1, min(N, target_tile // max(per_batch_bytes, 1)))
    if max_batch_tile is not None:
        bn = max(1, min(bn, int(max_batch_tile)))
    # TODO(synk): if a single batch element exceeds the tile target, the channel
    # / spatial axes would need tiling too; not needed at these model sizes.

    n_full = N // bn                             # full-size stats tiles
    r = N - n_full * bn                          # ragged tail handled below in XLA
    # Split the stats reduction into P independent accumulators so the leading
    # "parallel" grid axis can shard across TensorCores (v7x megacore).
    P = 2 if (n_full >= 2 and n_full % 2 == 0) else 1
    n_inner = n_full // P
    tile_count = float(bn * HW)                  # samples per full tile (static)

    # --- pass 1: per-channel running mean / M2 over full tiles ---------------
    mean_p, m2_p = pl.pallas_call(
        functools.partial(_stats_kernel, tile_count=tile_count),
        out_shape=(jax.ShapeDtypeStruct((P, C, 1), jnp.float32),
                   jax.ShapeDtypeStruct((P, C, 1), jnp.float32)),
        grid_spec=pltpu.PrefetchScalarGridSpec(
            num_scalar_prefetch=0,
            grid=(P, n_inner),
            in_specs=[
                pl.BlockSpec((bn, C, HW),
                             lambda p, j: (p * n_inner + j, 0, 0)),
            ],
            out_specs=(
                pl.BlockSpec((1, C, 1), lambda p, j: (p, 0, 0)),
                pl.BlockSpec((1, C, 1), lambda p, j: (p, 0, 0)),
            ),
        ),
        compiler_params=pltpu.CompilerParams(
            dimension_semantics=("parallel", "arbitrary"),
            vmem_limit_bytes=vmem_limit),
        cost_estimate=pl.CostEstimate(
            flops=5 * n_full * bn * C * HW, transcendentals=0,
            bytes_accessed=n_full * bn * C * HW * itemsize),
    )(x3)

    # --- fold partial accumulators (tiny (C,1) arrays, exact) ----------------
    mean_c, m2_c = mean_p[0], m2_p[0]
    cnt_c = float(n_inner) * tile_count
    for p in range(1, P):
        mean_c, m2_c, cnt_c = _chan_combine(
            mean_c, m2_c, cnt_c, mean_p[p], m2_p[p],
            float(n_inner) * tile_count)
    if r > 0:
        # Ragged batch tail (< one tile): folded in with plain XLA ops so the
        # stats kernel never sees partial tiles and bn stays at target size for
        # any N (incl. prime / odd batch sizes).
        tail = x3[n_full * bn:].astype(jnp.float32)            # (r, C, HW)
        mean_t = jnp.mean(tail, axis=(0, 2)).reshape(C, 1)
        m2_t = jnp.sum((tail - mean_t.reshape(1, C, 1)) ** 2,
                       axis=(0, 2)).reshape(C, 1)
        mean_c, m2_c, cnt_c = _chan_combine(
            mean_c, m2_c, cnt_c, mean_t, m2_t, float(r * HW))

    denom = max(M - 1, 1)                                      # guard M == 1
    std = jnp.sqrt(jnp.maximum(m2_c / denom, 0.0))
    g2 = g3.reshape(C, 1)
    b2 = b3.reshape(C, 1)
    scale = g2 / (std + eps)                                   # eps on std (torch-exact)
    shift = b2 - mean_c * scale
    scale3 = scale.reshape(1, C, 1)
    shift3 = shift.reshape(1, C, 1)

    # --- pass 2: elementwise normalize (single FMA per element) --------------
    n_all = pl.cdiv(N, bn)           # ragged last block: OOB writes are masked
    out3 = pl.pallas_call(
        _normalize_kernel,
        out_shape=jax.ShapeDtypeStruct((N, C, HW), out_dtype),
        grid_spec=pltpu.PrefetchScalarGridSpec(
            num_scalar_prefetch=0,
            grid=(n_all,),
            in_specs=[
                pl.BlockSpec((bn, C, HW), lambda i: (i, 0, 0)),
                pl.BlockSpec((1, C, 1), lambda i: (0, 0, 0)),
                pl.BlockSpec((1, C, 1), lambda i: (0, 0, 0)),
            ],
            out_specs=pl.BlockSpec((bn, C, HW), lambda i: (i, 0, 0)),
        ),
        compiler_params=pltpu.CompilerParams(
            dimension_semantics=("parallel",),
            vmem_limit_bytes=vmem_limit),
        cost_estimate=pl.CostEstimate(
            flops=2 * N * C * HW, transcendentals=0,
            bytes_accessed=2 * x_bytes),
    )(x3, scale3, shift3)

    return out3.reshape(N, C, H, W)


# ---------------------------------------------------------------------------
# Pure-JAX reference (mirrors the PyTorch forward)
# ---------------------------------------------------------------------------
def _reference(x_nchw, gamma, beta, eps=1e-6):
    C = x_nchw.shape[1]
    mean = jnp.mean(x_nchw, axis=(0, 2, 3), keepdims=True)
    std = jnp.std(x_nchw, axis=(0, 2, 3), keepdims=True, ddof=1)  # unbiased
    g = gamma.reshape(1, C, 1, 1)
    b = beta.reshape(1, C, 1, 1)
    return g * (x_nchw - mean) / (std + eps) + b


if __name__ == "__main__":
    key = jax.random.PRNGKey(0)
    k1, k2 = jax.random.split(key)

    # --- test 1: small input -> fused single-kernel VMEM-resident fast path ---
    N, C, H, W = 2, 4, 16, 16
    x = jax.random.normal(k1, (N, C, H, W), dtype=jnp.float32) + 0.5
    gamma = jnp.ones((C, 1, 1), dtype=jnp.float32)   # module registers ones buffers
    beta = jnp.ones((C, 1, 1), dtype=jnp.float32)

    ln = jax.jit(functools.partial(layer_norm_2d, eps=1e-6))
    out = jax.block_until_ready(ln(x, gamma, beta))
    ref = _reference(x, gamma, beta, eps=1e-6)
    assert out.shape == (N, C, H, W)
    assert jnp.allclose(out, ref, atol=1e-4, rtol=1e-4), float(
        jnp.max(jnp.abs(out - ref)))

    # --- test 2: force the tiled path (ragged N, P=2 stats split) -------------
    N2, C2, H2, W2 = 9, 12, 16, 16
    x2 = jax.random.normal(k2, (N2, C2, H2, W2), dtype=jnp.float32) * 2.0 + 3.0
    gamma2 = jnp.ones((C2, 1, 1), dtype=jnp.float32)
    beta2 = jnp.ones((C2, 1, 1), dtype=jnp.float32)

    ln_tiled = jax.jit(functools.partial(
        layer_norm_2d, eps=1e-6, force_tiled=True, max_batch_tile=2))
    out2 = jax.block_until_ready(ln_tiled(x2, gamma2, beta2))
    ref2 = _reference(x2, gamma2, beta2, eps=1e-6)
    assert out2.shape == (N2, C2, H2, W2)
    assert jnp.allclose(out2, ref2, atol=1e-4, rtol=1e-4), float(
        jnp.max(jnp.abs(out2 - ref2)))

    print("KERNEL_OK")
</pallas_src>

<mosaic_0001>
module attributes {stable_mosaic.version = 11 : i64} {
  func.func @_fused_kernel(%arg0: i32, %arg1: memref<2x4x256xf32, #tpu.memory_space<vmem>>, %arg2: memref<1x4x1xf32, #tpu.memory_space<vmem>>, %arg3: memref<1x4x1xf32, #tpu.memory_space<vmem>>, %arg4: memref<2x4x256xf32, #tpu.memory_space<vmem>>) attributes {dimension_semantics = [#tpu.dimension_semantics<arbitrary>], iteration_bounds = array<i64: 1>, scalar_prefetch = 0 : i64, scratch_operands = 0 : i64, tpu.core_type = #tpu.core_type<tc>, window_params = [{pipeline_mode = #tpu.pipeline_mode<synchronous>, transform_indices = @transform_0, window_bounds = array<i64: 2, 4, 256>}, {pipeline_mode = #tpu.pipeline_mode<synchronous>, transform_indices = @transform_1, window_bounds = array<i64: 1, 4, 1>}, {pipeline_mode = #tpu.pipeline_mode<synchronous>, transform_indices = @transform_2, window_bounds = array<i64: 1, 4, 1>}, {pipeline_mode = #tpu.pipeline_mode<synchronous>, transform_indices = @transform_3, window_bounds = array<i64: 2, 4, 256>}]} {
    %c0 = arith.constant 0 : index
    %c0_0 = arith.constant 0 : index
    %c0_1 = arith.constant 0 : index
    %0 = vector.load %arg1[%c0, %c0_0, %c0_1] : memref<2x4x256xf32, #tpu.memory_space<vmem>>, vector<2x4x256xf32>
    %cst = arith.constant dense<0.000000e+00> : vector<2x4xf32>
    %1 = vector.multi_reduction <add>, %0, %cst [2] : vector<2x4x256xf32> to vector<2x4xf32>
    %2 = vector.shape_cast %1 : vector<2x4xf32> to vector<2x4x1xf32>
    %cst_2 = arith.constant dense<0.000000e+00> : vector<4x1xf32>
    %3 = vector.multi_reduction <add>, %2, %cst_2 [0] : vector<2x4x1xf32> to vector<4x1xf32>
    %4 = vector.shape_cast %3 : vector<4x1xf32> to vector<1x4x1xf32>
    %cst_3 = arith.constant 0.001953125 : f32
    %5 = vector.broadcast %cst_3 : f32 to vector<1x4x1xf32>
    %6 = arith.mulf %4, %5 : vector<1x4x1xf32>
    %7 = vector.broadcast %6 : vector<1x4x1xf32> to vector<2x4x256xf32>
    %8 = arith.subf %0, %7 : vector<2x4x256xf32>
    %9 = arith.mulf %8, %8 : vector<2x4x256xf32>
    %cst_4 = arith.constant dense<0.000000e+00> : vector<2x4xf32>
    %10 = vector.multi_reduction <add>, %9, %cst_4 [2] : vector<2x4x256xf32> to vector<2x4xf32>
    %11 = vector.shape_cast %10 : vector<2x4xf32> to vector<2x4x1xf32>
    %cst_5 = arith.constant dense<0.000000e+00> : vector<4x1xf32>
    %12 = vector.multi_reduction <add>, %11, %cst_5 [0] : vector<2x4x1xf32> to vector<4x1xf32>
    %13 = vector.shape_cast %12 : vector<4x1xf32> to vector<1x4x1xf32>
    %cst_6 = arith.constant 0.00195694715 : f32
    %14 = vector.broadcast %cst_6 : f32 to vector<1x4x1xf32>
    %15 = arith.mulf %13, %14 : vector<1x4x1xf32>
    %16 = math.sqrt %15 : vector<1x4x1xf32>
    %c0_7 = arith.constant 0 : index
    %c0_8 = arith.constant 0 : index
    %c0_9 = arith.constant 0 : index
    %17 = vector.load %arg2[%c0_7, %c0_8, %c0_9] : memref<1x4x1xf32, #tpu.memory_space<vmem>>, vector<1x4x1xf32>
    %cst_10 = arith.constant 9.99999997E-7 : f32
    %18 = vector.broadcast %cst_10 : f32 to vector<1x4x1xf32>
    %19 = arith.addf %16, %18 : vector<1x4x1xf32>
    %20 = arith.divf %17, %19 : vector<1x4x1xf32>
    %21 = vector.broadcast %20 : vector<1x4x1xf32> to vector<2x4x256xf32>
    %22 = arith.mulf %8, %21 : vector<2x4x256xf32>
    %c0_11 = arith.constant 0 : index
    %c0_12 = arith.constant 0 : index
    %c0_13 = arith.constant 0 : index
    %23 = vector.load %arg3[%c0_11, %c0_12, %c0_13] : memref<1x4x1xf32, #tpu.memory_space<vmem>>, vector<1x4x1xf32>
    %24 = vector.broadcast %23 : vector<1x4x1xf32> to vector<2x4x256xf32>
    %25 = arith.addf %22, %24 : vector<2x4x256xf32>
    %c0_14 = arith.constant 0 : index
    %c0_15 = arith.constant 0 : index
    %c0_16 = arith.constant 0 : index
    %26 = vector.load %arg4[%c0_14, %c0_15, %c0_16] : memref<2x4x256xf32, #tpu.memory_space<vmem>>, vector<2x4x256xf32>
    tpu.vector_store %arg4[%c0_14, %c0_15, %c0_16], %25 {strides = array<i32>} : memref<2x4x256xf32, #tpu.memory_space<vmem>>, vector<2x4x256xf32>,
    return
  }
  func.func @transform_0(%arg0: i32) -> (i32, i32, i32) {
    %c0_i32 = arith.constant 0 : i32
    %c0_i32_0 = arith.constant 0 : i32
    %c0_i32_1 = arith.constant 0 : i32
    %c0_i32_2 = arith.constant 0 : i32
    return %c0_i32, %c0_i32_0, %c0_i32_1 : i32, i32, i32
  }
  func.func @transform_1(%arg0: i32) -> (i32, i32, i32) {
    %c0_i32 = arith.constant 0 : i32
    %c0_i32_0 = arith.constant 0 : i32
    %c0_i32_1 = arith.constant 0 : i32
    %c0_i32_2 = arith.constant 0 : i32
    return %c0_i32, %c0_i32_0, %c0_i32_1 : i32, i32, i32
  }
  func.func @transform_2(%arg0: i32) -> (i32, i32, i32) {
    %c0_i32 = arith.constant 0 : i32
    %c0_i32_0 = arith.constant 0 : i32
    %c0_i32_1 = arith.constant 0 : i32
    %c0_i32_2 = arith.constant 0 : i32
    return %c0_i32, %c0_i32_0, %c0_i32_1 : i32, i32, i32
  }
  func.func @transform_3(%arg0: i32) -> (i32, i32, i32) {
    %c0_i32 = arith.constant 0 : i32
    %c0_i32_0 = arith.constant 0 : i32
    %c0_i32_1 = arith.constant 0 : i32
    %c0_i32_2 = arith.constant 0 : i32
    return %c0_i32, %c0_i32_0, %c0_i32_1 : i32, i32, i32
  }
}

</mosaic_0001>

<llo_original>
// kernel: layer_norm_2d.1
$region0: #{layer_norm_2d.1}
  #allocation0 [shape = 'u32[]', space=smem, size = 0x4, offset = 0x4, fixed_abs, tag = 'smem constant byte address 0x4 - core index']
  #allocation1 [shape = 'u32[72,128]{1,0:T(1,128)}', space=vmem, size = 0x9000, scoped, tag = 'internal scratch']
  %s0 = inlined_call_operand.vmem [shape: f32[2,4,256], index: 0, kind: input, shape index: {}]
  %s1 = inlined_call_operand.vmem [shape: f32[1,4,1], index: 1, kind: input, shape index: {}]
  %s2 = inlined_call_operand.vmem [shape: f32[1,4,1], index: 2, kind: input, shape index: {}]
  %s3 = inlined_call_operand.vmem [shape: f32[2,4,256], index: 3, kind: output, shape index: {}]
  %s4 = sld [smem:[#allocation0]]
  $region22: #{layer_norm_2d.1} parent=0
    _
  %s6 = ssub.s32 1, %s4
  %s7 = scalar_select 0, %s6, %s4
  // Predicated region
  $region2: #{layer_norm_2d.1} parent=0 // pred_check
    _
  $region3: #{layer_norm_2d.1} parent=0 // pred_check_branch
    %9 = sbr.rel (0) target = $region5
  $region4: #{layer_norm_2d.1} parent=0 // pred_region
    _
  $region5: #{layer_norm_2d.1} parent=0 // pred_fallthru
    _
  // Predicated region
  $region6: #{layer_norm_2d.1} parent=0 // pred_check
    _
  $region7: #{layer_norm_2d.1} parent=0 // pred_check_branch
    %11 = sbr.rel (0) target = $region9
  $region8: #{layer_norm_2d.1} parent=0 // pred_region
    _
  $region9: #{layer_norm_2d.1} parent=0 // pred_fallthru
    _
  // Predicated region
  $region10: #{layer_norm_2d.1} parent=0 // pred_check
    _
  $region11: #{layer_norm_2d.1} parent=0 // pred_check_branch
    %13 = sbr.rel (0) target = $region13
  $region12: #{layer_norm_2d.1} parent=0 // pred_region
    _
  $region13: #{layer_norm_2d.1} parent=0 // pred_fallthru
    _
  %v14 = vld [vmem:[%s0] sm:$0xff]
  %v15 = vld [vmem:[%s0 + $0x8] sm:$0xff]
  %18 = vst [vmem:[#allocation1] ss:$2 sm:$0xff] %v14
  %v19 = vld.sshfl [vmem:[#allocation1] sm:$0xff pattern:$0x75316420]
  %v20 = vld.sshfl [vmem:[#allocation1 + $0x8] sm:$0xff pattern:$0x75316420]
  %s21 = scalar_lea.vmem [#allocation1], 16
  %22 = vst [vmem:[%s21] ss:$2 sm:$0xff] %v15
  %v23 = vld.sshfl [vmem:[#allocation1 + $0x10] sm:$0xff pattern:$0x75316420]
  %v24 = vld.sshfl [vmem:[#allocation1 + $0x18] sm:$0xff pattern:$0x75316420]
  %vm29 = vcmask 1043456
  %v30 = vsel %vm29, %v19, 0.0
  %v31 = vsel %vm29, %v20, 0.0
  %v32 = vadd.f32 %v30, %v31
  %33 = vadd.xlane.f32.xlu0 %v32
  %v34 = vpop.xlane.xlu0 %33
  %v35 = vsel %vm29, %v23, 0.0
  %v36 = vsel %vm29, %v24, 0.0
  %v37 = vadd.f32 %v35, %v36
  %38 = vadd.xlane.f32.xlu0 %v37
  %v39 = vpop.xlane.xlu0 %38
  %v40 = vsel %vm29, %v34, 0.0
  %v41 = vsel %vm29, %v39, 0.0
  %v42 = vadd.f32 %v40, %v41
  %v43 = vmul.f32 %v42, 0.001953125
  %v46 = vunpack.c.l.s4 839922192
  %v47 = vunpack.c.0.s8 %v46
  %v48 = vperm.slane %v43, %v47
  %v50 = vsub.f32 %v14, %v48
  %v51 = vsub.f32 %v15, %v48
  %v52 = vmul.f32 %v50, %v50
  %v53 = vmul.f32 %v51, %v51
  %56 = vst [vmem:[#allocation1] ss:$2 sm:$0xff] %v52
  %v57 = vld.sshfl [vmem:[#allocation1] sm:$0xff pattern:$0x75316420]
  %v58 = vld.sshfl [vmem:[#allocation1 + $0x8] sm:$0xff pattern:$0x75316420]
  %s59 = scalar_lea.vmem [#allocation1], 16
  %60 = vst [vmem:[%s59] ss:$2 sm:$0xff] %v53
  %v61 = vld.sshfl [vmem:[#allocation1 + $0x10] sm:$0xff pattern:$0x75316420]
  %v62 = vld.sshfl [vmem:[#allocation1 + $0x18] sm:$0xff pattern:$0x75316420]
  %v67 = vsel %vm29, %v57, 0.0
  %v68 = vsel %vm29, %v58, 0.0
  %v69 = vadd.f32 %v67, %v68
  %70 = vadd.xlane.f32.xlu0 %v69
  %v71 = vpop.xlane.xlu0 %70
  %v72 = vsel %vm29, %v61, 0.0
  %v73 = vsel %vm29, %v62, 0.0
  %v74 = vadd.f32 %v72, %v73
  %75 = vadd.xlane.f32.xlu0 %v74
  %v76 = vpop.xlane.xlu0 %75
  %v77 = vsel %vm29, %v71, 0.0
  %v78 = vsel %vm29, %v76, 0.0
  %v79 = vadd.f32 %v77, %v78
  %v80 = vmul.f32 %v79, 0.0019569471
  %v81 = vrsqrt.pop %v80
  %v82 = vmul.f32 %v81, %v80
  %v83 = vmul.f32 %v82, %v81
  %v84 = vmul.f32 0.5, %v83
  %v85 = vsub.f32 1.5, %v84
  %v86 = vmul.f32 %v81, %v85
  %v87 = vmul.f32 %v80, %v86
  %vm88 = vcmp.eq.f32.partialorder %v80, inf
  %v89 = vsel %vm88, %v80, %v87
  %vm90 = vcmp.eq.f32.partialorder %v80, 0.0
  %v91 = vand.u32 %v80, 2147483648
  %v92 = vsel %vm90, %v91, %v89
  %v93 = vld [vmem:[%s1] sm:$0xf]
  %v94 = vadd.f32 %v92, 1e-06
  %v95 = vrcp.pop %v94
  %v96 = vmul.f32 %v94, %v95
  %v97 = vsub.f32 1.0, %v96
  %v98 = vmul.f32 %v95, %v97
  %v99 = vadd.f32 %v95, %v98
  %vm100 = vweird.f32 %v94
  %vm101 = vweird.f32 %v95
  %vm102 = vmor %vm100, %vm101
  %v103 = vsel %vm102, %v95, %v99
  %v104 = vand.u32 2147483647, %v94
  %vm105 = vcmp.eq.f32.partialorder %v104, 8.507059e+37
  %v106 = vand.u32 %v94, 2147483648
  %v107 = vor.u32 1.1754944e-38, %v106
  %v108 = vsel %vm105, %v107, %v103
  %v109 = vmul.f32 %v93, %v108
  %111 = vset.pattern.permute.xlu0 0
  %112 = vperm.xlu0 %111, %v109
  %v113 = vpop.permute.xlu0 %112
  %v115 = vunpack.c.l.s4 839922192
  %v116 = vunpack.c.0.s8 %v115
  %v117 = vperm.slane %v113, %v116
  %v119 = vmul.f32 %v50, %v117
  %v120 = vmul.f32 %v51, %v117
  %v121 = vld [vmem:[%s2] sm:$0xf]
  %123 = vset.pattern.permute.xlu0 0
  %124 = vperm.xlu0 %123, %v121
  %v125 = vpop.permute.xlu0 %124
  %v127 = vunpack.c.l.s4 839922192
  %v128 = vunpack.c.0.s8 %v127
  %v129 = vperm.slane %v125, %v128
  %v131 = vadd.f32 %v119, %v129
  %v132 = vadd.f32 %v120, %v129
  %133 = vst [vmem:[%s3] sm:$0xff] %v131
  %134 = vst [vmem:[%s3 + $0x8] sm:$0xff] %v132
  // Predicated region
  $region14: #{layer_norm_2d.1} parent=0 // pred_check
    _
  $region15: #{layer_norm_2d.1} parent=0 // pred_check_branch
    %136 = sbr.rel (0) target = $region17
  $region16: #{layer_norm_2d.1} parent=0 // pred_region
    _
  $region17: #{layer_norm_2d.1} parent=0 // pred_fallthru
    _
  // Predicated region
  $region18: #{layer_norm_2d.1} parent=0 // pred_check
    _
  $region19: #{layer_norm_2d.1} parent=0 // pred_check_branch
    %138 = sbr.rel (0) target = $region21
  $region20: #{layer_norm_2d.1} parent=0 // pred_region
    _
  $region21: #{layer_norm_2d.1} parent=0 // pred_fallthru
    _

</llo_original>
